<compile_context>
chip_gen: v7x
topology: tpu7x:2x2x1
jax: 0.10.0
libtpu: 0.0.40
codegen_flags: <defaults>
</compile_context>

<pallas_src>
import jax
import jax.numpy as jnp
from jax import lax
from jax.experimental import pallas as pl
from jax.experimental.pallas import tpu as pltpu

LANES = 128
STRIP_SUBTILES = 8                    # 8 sublanes x 128 lanes = one f32 vreg / row strip
STRIP_LANES = STRIP_SUBTILES * LANES  # 1024 batch elements per strip


def mlp_kernel(w1_ref, b1_ref, w2_ref, b2_ref, w3_ref, b3_ref, x_ref, o_ref):
    # x_ref: [8, S_blk, 128] (features major, batch on sublanes*lanes)
    # o_ref: [S_blk, 128] f32.  w*/b*: flat f32 scalars in SMEM.
    s_blk = x_ref.shape[1]
    n_strips = s_blk // STRIP_SUBTILES

    def layer(rows_in, w_ref, b_ref, in_f, out_f):
        out_rows = []
        for j in range(out_f):
            # Unrolled VPU broadcast-FMA chain; weights read as SMEM scalars.
            z = rows_in[0] * w_ref[j * in_f + 0]
            for i in range(1, in_f):
                z = z + rows_in[i] * w_ref[j * in_f + i]
            z = z + b_ref[j]
            # sigmoid(z) = 1 / (1 + exp(-z)); exp + approx reciprocal both on
            # the EUP (keeps transcendentals off the VALU slots).
            out_rows.append(pl.reciprocal(1.0 + jnp.exp(-z), approx=True))
        return out_rows

    def strip_body(s, carry):
        off = pl.multiple_of(s * STRIP_SUBTILES, STRIP_SUBTILES)
        # Dense [8, 128] tiles; upcast to f32 so compute is identical for a
        # bf16 HBM stream (upcast is cheap VPU filler).
        rows = [x_ref[f, pl.ds(off, STRIP_SUBTILES), :].astype(jnp.float32)
                for f in range(8)]
        h1 = layer(rows, w1_ref, b1_ref, 8, 6)   # 6 x [8,128]
        h2 = layer(h1, w2_ref, b2_ref, 6, 4)     # 4 x [8,128]
        h3 = layer(h2, w3_ref, b3_ref, 4, 1)     # 1 x [8,128]
        o_ref[pl.ds(off, STRIP_SUBTILES), :] = h3[0]   # dense unmasked store
        return carry

    lax.fori_loop(0, n_strips, strip_body, 0)


def reference_forward(x, params):
    h = jax.nn.sigmoid(x @ params["w1"].T + params["b1"])
    h = jax.nn.sigmoid(h @ params["w2"].T + params["b2"])
    return jax.nn.sigmoid(h @ params["w3"].T + params["b3"])


def mlp_forward(x, params, *, block_lanes=32768, stream_dtype=jnp.float32,
                feature_major=False, use_pallas=None):
    """x: [n, 8] (or [8, n] if feature_major=True).  params: PyTorch layout
    (w: [out, in], b: [out]).  Returns [n, 1] f32."""
    if feature_major:
        assert x.shape[0] == 8
        n = x.shape[1]
    else:
        assert x.shape[1] == 8
        n = x.shape[0]

    # Small-batch bypass: let XLA fuse the tiny MLP (pallas_call overhead wins).
    if use_pallas is None:
        use_pallas = n >= 2048
    if not use_pallas:
        xr = x.T if feature_major else x
        return reference_forward(xr.astype(jnp.float32), params)

    # Flat f32 weights/biases -> SMEM scalars.
    w1 = params["w1"].reshape(-1).astype(jnp.float32)  # [48], row-major [out,in]
    b1 = params["b1"].astype(jnp.float32)              # [6]
    w2 = params["w2"].reshape(-1).astype(jnp.float32)  # [24]
    b2 = params["b2"].astype(jnp.float32)              # [4]
    w3 = params["w3"].reshape(-1).astype(jnp.float32)  # [4]
    b3 = params["b3"].astype(jnp.float32)              # [1]

    # Feature-major activation stream (transpose skipped if producer supplies it).
    x_t = (x if feature_major else x.T).astype(stream_dtype)   # [8, n]

    # Batch block: multiple of 1024 lanes; ~32K lanes default (1 MiB f32 input /
    # step, double-buffered => a few MiB VMEM, safe on v5e/v6e and v7x's 64 MiB).
    bb = max(STRIP_LANES, (block_lanes // STRIP_LANES) * STRIP_LANES)
    if n <= bb:
        bb = ((n + STRIP_LANES - 1) // STRIP_LANES) * STRIP_LANES
    n_pad = ((n + bb - 1) // bb) * bb
    if n_pad != n:
        x_t = jnp.pad(x_t, ((0, 0), (0, n_pad - n)))
    s_total = n_pad // LANES
    s_blk = bb // LANES
    grid = (n_pad // bb,)

    # Free metadata reshape to sublane-dense [8, n/128, 128] tiles.
    x_3d = x_t.reshape(8, s_total, LANES)

    def smem(a):
        return pl.BlockSpec(a.shape, lambda i: (0,) * a.ndim,
                            memory_space=pltpu.MemorySpace.SMEM)

    out = pl.pallas_call(
        mlp_kernel,
        out_shape=jax.ShapeDtypeStruct((s_total, LANES), jnp.float32),
        grid=grid,
        in_specs=[smem(w1), smem(b1), smem(w2), smem(b2), smem(w3), smem(b3),
                  pl.BlockSpec((8, s_blk, LANES), lambda i: (0, i, 0))],
        out_specs=pl.BlockSpec((s_blk, LANES), lambda i: (i, 0)),
        compiler_params=pltpu.CompilerParams(
            dimension_semantics=("parallel",)),   # batch axis sharded across TCs
    )(w1, b1, w2, b2, w3, b3, x_3d)

    return out.reshape(n_pad)[:n, None]            # [n, 1]


def init_params(key):
    # Linear(8,6), Linear(6,4), Linear(4,1); PyTorch convention w: [out, in].
    ks = jax.random.split(key, 6)

    def uinit(k, shape, fan_in):
        bound = 1.0 / jnp.sqrt(fan_in)
        return jax.random.uniform(k, shape, jnp.float32, -bound, bound)

    return {
        "w1": uinit(ks[0], (6, 8), 8.0),
        "b1": uinit(ks[1], (6,), 8.0),
        "w2": uinit(ks[2], (4, 6), 6.0),
        "b2": uinit(ks[3], (4,), 6.0),
        "w3": uinit(ks[4], (1, 4), 4.0),
        "b3": uinit(ks[5], (1,), 4.0),
    }


if __name__ == "__main__":
    key = jax.random.PRNGKey(0)
    kx, kp = jax.random.split(key)
    params = init_params(kp)

    # 1) Toy batch=8 (matches the original module's usage) via the XLA bypass.
    x8 = jax.random.normal(jax.random.fold_in(kx, 0), (8, 8), jnp.float32)
    ref8 = reference_forward(x8, params)
    out = jax.block_until_ready(mlp_forward(x8, params))
    assert out.shape == (8, 1)
    assert jnp.allclose(out, ref8, atol=1e-5, rtol=1e-5), "bypass mismatch"

    # 2) Force the Pallas kernel at the toy size (single padded block).
    out = jax.block_until_ready(mlp_forward(x8, params, use_pallas=True))
    assert jnp.allclose(out, ref8, atol=2e-3, rtol=2e-3), "pallas small mismatch"

    # 3) Multi-block grid + strip loop + padding (f32 stream).
    xb = jax.random.normal(jax.random.fold_in(kx, 1), (5000, 8), jnp.float32)
    refb = reference_forward(xb, params)
    out = jax.block_until_ready(
        mlp_forward(xb, params, use_pallas=True, block_lanes=2048))
    assert out.shape == (5000, 1)
    assert jnp.allclose(out, refb, atol=2e-3, rtol=2e-3), "pallas f32 mismatch"

    # 4) bf16 HBM stream + feature-major input (no host-side transpose pass).
    out = jax.block_until_ready(
        mlp_forward(xb.T, params, use_pallas=True, block_lanes=2048,
                    stream_dtype=jnp.bfloat16, feature_major=True))
    assert out.shape == (5000, 1)
    assert jnp.allclose(out, refb, atol=2e-2, rtol=2e-2), "pallas bf16 mismatch"

    print("KERNEL_OK")
</pallas_src>

<mosaic_0001>
module attributes {stable_mosaic.version = 11 : i64} {
  func.func @mlp_kernel(%arg0: i32, %arg1: memref<48xf32, #tpu.memory_space<smem>>, %arg2: memref<6xf32, #tpu.memory_space<smem>>, %arg3: memref<24xf32, #tpu.memory_space<smem>>, %arg4: memref<4xf32, #tpu.memory_space<smem>>, %arg5: memref<4xf32, #tpu.memory_space<smem>>, %arg6: memref<1xf32, #tpu.memory_space<smem>>, %arg7: memref<8x8x128xf32, #tpu.memory_space<vmem>>, %arg8: memref<8x128xf32, #tpu.memory_space<vmem>>) attributes {dimension_semantics = [#tpu.dimension_semantics<parallel>], iteration_bounds = array<i64: 1>, scalar_prefetch = 0 : i64, scratch_operands = 0 : i64, tpu.core_type = #tpu.core_type<tc>, window_params = [{transform_indices = @transform_0, window_bounds = array<i64: 48>}, {transform_indices = @transform_1, window_bounds = array<i64: 6>}, {transform_indices = @transform_2, window_bounds = array<i64: 24>}, {transform_indices = @transform_3, window_bounds = array<i64: 4>}, {transform_indices = @transform_4, window_bounds = array<i64: 4>}, {transform_indices = @transform_5, window_bounds = array<i64: 1>}, {transform_indices = @transform_6, window_bounds = array<i64: 8, 8, 128>}, {transform_indices = @transform_7, window_bounds = array<i64: 8, 128>}]} {
    %c0_i32 = arith.constant 0 : i32
    %c8_i32 = arith.constant 8 : i32
    %0 = arith.muli %c0_i32, %c8_i32 : i32
    %1 = tpu.assume_multiple %0, 8 : i32
    %c0 = arith.constant 0 : index
    %2 = arith.index_cast %1 : i32 to index
    %c0_0 = arith.constant 0 : index
    %3 = vector.load %arg7[%c0, %2, %c0_0] : memref<8x8x128xf32, #tpu.memory_space<vmem>>, vector<1x8x128xf32>
    %4 = vector.shape_cast %3 : vector<1x8x128xf32> to vector<8x128xf32>
    %c1 = arith.constant 1 : index
    %5 = arith.index_cast %1 : i32 to index
    %c0_1 = arith.constant 0 : index
    %6 = vector.load %arg7[%c1, %5, %c0_1] : memref<8x8x128xf32, #tpu.memory_space<vmem>>, vector<1x8x128xf32>
    %7 = vector.shape_cast %6 : vector<1x8x128xf32> to vector<8x128xf32>
    %c2 = arith.constant 2 : index
    %8 = arith.index_cast %1 : i32 to index
    %c0_2 = arith.constant 0 : index
    %9 = vector.load %arg7[%c2, %8, %c0_2] : memref<8x8x128xf32, #tpu.memory_space<vmem>>, vector<1x8x128xf32>
    %10 = vector.shape_cast %9 : vector<1x8x128xf32> to vector<8x128xf32>
    %c3 = arith.constant 3 : index
    %11 = arith.index_cast %1 : i32 to index
    %c0_3 = arith.constant 0 : index
    %12 = vector.load %arg7[%c3, %11, %c0_3] : memref<8x8x128xf32, #tpu.memory_space<vmem>>, vector<1x8x128xf32>
    %13 = vector.shape_cast %12 : vector<1x8x128xf32> to vector<8x128xf32>
    %c4 = arith.constant 4 : index
    %14 = arith.index_cast %1 : i32 to index
    %c0_4 = arith.constant 0 : index
    %15 = vector.load %arg7[%c4, %14, %c0_4] : memref<8x8x128xf32, #tpu.memory_space<vmem>>, vector<1x8x128xf32>
    %16 = vector.shape_cast %15 : vector<1x8x128xf32> to vector<8x128xf32>
    %c5 = arith.constant 5 : index
    %17 = arith.index_cast %1 : i32 to index
    %c0_5 = arith.constant 0 : index
    %18 = vector.load %arg7[%c5, %17, %c0_5] : memref<8x8x128xf32, #tpu.memory_space<vmem>>, vector<1x8x128xf32>
    %19 = vector.shape_cast %18 : vector<1x8x128xf32> to vector<8x128xf32>
    %c6 = arith.constant 6 : index
    %20 = arith.index_cast %1 : i32 to index
    %c0_6 = arith.constant 0 : index
    %21 = vector.load %arg7[%c6, %20, %c0_6] : memref<8x8x128xf32, #tpu.memory_space<vmem>>, vector<1x8x128xf32>
    %22 = vector.shape_cast %21 : vector<1x8x128xf32> to vector<8x128xf32>
    %c7 = arith.constant 7 : index
    %23 = arith.index_cast %1 : i32 to index
    %c0_7 = arith.constant 0 : index
    %24 = vector.load %arg7[%c7, %23, %c0_7] : memref<8x8x128xf32, #tpu.memory_space<vmem>>, vector<1x8x128xf32>
    %25 = vector.shape_cast %24 : vector<1x8x128xf32> to vector<8x128xf32>
    %c0_8 = arith.constant 0 : index
    %26 = memref.load %arg1[%c0_8] : memref<48xf32, #tpu.memory_space<smem>>
    %27 = vector.broadcast %26 : f32 to vector<8x128xf32>
    %28 = arith.mulf %4, %27 : vector<8x128xf32>
    %c1_9 = arith.constant 1 : index
    %29 = memref.load %arg1[%c1_9] : memref<48xf32, #tpu.memory_space<smem>>
    %30 = vector.broadcast %29 : f32 to vector<8x128xf32>
    %31 = arith.mulf %7, %30 : vector<8x128xf32>
    %32 = arith.addf %28, %31 : vector<8x128xf32>
    %c2_10 = arith.constant 2 : index
    %33 = memref.load %arg1[%c2_10] : memref<48xf32, #tpu.memory_space<smem>>
    %34 = vector.broadcast %33 : f32 to vector<8x128xf32>
    %35 = arith.mulf %10, %34 : vector<8x128xf32>
    %36 = arith.addf %32, %35 : vector<8x128xf32>
    %c3_11 = arith.constant 3 : index
    %37 = memref.load %arg1[%c3_11] : memref<48xf32, #tpu.memory_space<smem>>
    %38 = vector.broadcast %37 : f32 to vector<8x128xf32>
    %39 = arith.mulf %13, %38 : vector<8x128xf32>
    %40 = arith.addf %36, %39 : vector<8x128xf32>
    %c4_12 = arith.constant 4 : index
    %41 = memref.load %arg1[%c4_12] : memref<48xf32, #tpu.memory_space<smem>>
    %42 = vector.broadcast %41 : f32 to vector<8x128xf32>
    %43 = arith.mulf %16, %42 : vector<8x128xf32>
    %44 = arith.addf %40, %43 : vector<8x128xf32>
    %c5_13 = arith.constant 5 : index
    %45 = memref.load %arg1[%c5_13] : memref<48xf32, #tpu.memory_space<smem>>
    %46 = vector.broadcast %45 : f32 to vector<8x128xf32>
    %47 = arith.mulf %19, %46 : vector<8x128xf32>
    %48 = arith.addf %44, %47 : vector<8x128xf32>
    %c6_14 = arith.constant 6 : index
    %49 = memref.load %arg1[%c6_14] : memref<48xf32, #tpu.memory_space<smem>>
    %50 = vector.broadcast %49 : f32 to vector<8x128xf32>
    %51 = arith.mulf %22, %50 : vector<8x128xf32>
    %52 = arith.addf %48, %51 : vector<8x128xf32>
    %c7_15 = arith.constant 7 : index
    %53 = memref.load %arg1[%c7_15] : memref<48xf32, #tpu.memory_space<smem>>
    %54 = vector.broadcast %53 : f32 to vector<8x128xf32>
    %55 = arith.mulf %25, %54 : vector<8x128xf32>
    %56 = arith.addf %52, %55 : vector<8x128xf32>
    %c0_16 = arith.constant 0 : index
    %57 = memref.load %arg2[%c0_16] : memref<6xf32, #tpu.memory_space<smem>>
    %58 = vector.broadcast %57 : f32 to vector<8x128xf32>
    %59 = arith.addf %56, %58 : vector<8x128xf32>
    %cst = arith.constant 0.000000e+00 : f32
    %60 = vector.broadcast %cst : f32 to vector<8x128xf32>
    %61 = arith.subf %60, %59 : vector<8x128xf32>
    %62 = math.exp %61 : vector<8x128xf32>
    %cst_17 = arith.constant 1.000000e+00 : f32
    %63 = vector.broadcast %cst_17 : f32 to vector<8x128xf32>
    %64 = arith.addf %63, %62 : vector<8x128xf32>
    %65 = tpu.reciprocal %64 {approx = true} : vector<8x128xf32> -> vector<8x128xf32>
    %c8 = arith.constant 8 : index
    %66 = memref.load %arg1[%c8] : memref<48xf32, #tpu.memory_space<smem>>
    %67 = vector.broadcast %66 : f32 to vector<8x128xf32>
    %68 = arith.mulf %4, %67 : vector<8x128xf32>
    %c9 = arith.constant 9 : index
    %69 = memref.load %arg1[%c9] : memref<48xf32, #tpu.memory_space<smem>>
    %70 = vector.broadcast %69 : f32 to vector<8x128xf32>
    %71 = arith.mulf %7, %70 : vector<8x128xf32>
    %72 = arith.addf %68, %71 : vector<8x128xf32>
    %c10 = arith.constant 10 : index
    %73 = memref.load %arg1[%c10] : memref<48xf32, #tpu.memory_space<smem>>
    %74 = vector.broadcast %73 : f32 to vector<8x128xf32>
    %75 = arith.mulf %10, %74 : vector<8x128xf32>
    %76 = arith.addf %72, %75 : vector<8x128xf32>
    %c11 = arith.constant 11 : index
    %77 = memref.load %arg1[%c11] : memref<48xf32, #tpu.memory_space<smem>>
    %78 = vector.broadcast %77 : f32 to vector<8x128xf32>
    %79 = arith.mulf %13, %78 : vector<8x128xf32>
    %80 = arith.addf %76, %79 : vector<8x128xf32>
    %c12 = arith.constant 12 : index
    %81 = memref.load %arg1[%c12] : memref<48xf32, #tpu.memory_space<smem>>
    %82 = vector.broadcast %81 : f32 to vector<8x128xf32>
    %83 = arith.mulf %16, %82 : vector<8x128xf32>
    %84 = arith.addf %80, %83 : vector<8x128xf32>
    %c13 = arith.constant 13 : index
    %85 = memref.load %arg1[%c13] : memref<48xf32, #tpu.memory_space<smem>>
    %86 = vector.broadcast %85 : f32 to vector<8x128xf32>
    %87 = arith.mulf %19, %86 : vector<8x128xf32>
    %88 = arith.addf %84, %87 : vector<8x128xf32>
    %c14 = arith.constant 14 : index
    %89 = memref.load %arg1[%c14] : memref<48xf32, #tpu.memory_space<smem>>
    %90 = vector.broadcast %89 : f32 to vector<8x128xf32>
    %91 = arith.mulf %22, %90 : vector<8x128xf32>
    %92 = arith.addf %88, %91 : vector<8x128xf32>
    %c15 = arith.constant 15 : index
    %93 = memref.load %arg1[%c15] : memref<48xf32, #tpu.memory_space<smem>>
    %94 = vector.broadcast %93 : f32 to vector<8x128xf32>
    %95 = arith.mulf %25, %94 : vector<8x128xf32>
    %96 = arith.addf %92, %95 : vector<8x128xf32>
    %c1_18 = arith.constant 1 : index
    %97 = memref.load %arg2[%c1_18] : memref<6xf32, #tpu.memory_space<smem>>
    %98 = vector.broadcast %97 : f32 to vector<8x128xf32>
    %99 = arith.addf %96, %98 : vector<8x128xf32>
    %cst_19 = arith.constant 0.000000e+00 : f32
    %100 = vector.broadcast %cst_19 : f32 to vector<8x128xf32>
    %101 = arith.subf %100, %99 : vector<8x128xf32>
    %102 = math.exp %101 : vector<8x128xf32>
    %cst_20 = arith.constant 1.000000e+00 : f32
    %103 = vector.broadcast %cst_20 : f32 to vector<8x128xf32>
    %104 = arith.addf %103, %102 : vector<8x128xf32>
    %105 = tpu.reciprocal %104 {approx = true} : vector<8x128xf32> -> vector<8x128xf32>
    %c16 = arith.constant 16 : index
    %106 = memref.load %arg1[%c16] : memref<48xf32, #tpu.memory_space<smem>>
    %107 = vector.broadcast %106 : f32 to vector<8x128xf32>
    %108 = arith.mulf %4, %107 : vector<8x128xf32>
    %c17 = arith.constant 17 : index
    %109 = memref.load %arg1[%c17] : memref<48xf32, #tpu.memory_space<smem>>
    %110 = vector.broadcast %109 : f32 to vector<8x128xf32>
    %111 = arith.mulf %7, %110 : vector<8x128xf32>
    %112 = arith.addf %108, %111 : vector<8x128xf32>
    %c18 = arith.constant 18 : index
    %113 = memref.load %arg1[%c18] : memref<48xf32, #tpu.memory_space<smem>>
    %114 = vector.broadcast %113 : f32 to vector<8x128xf32>
    %115 = arith.mulf %10, %114 : vector<8x128xf32>
    %116 = arith.addf %112, %115 : vector<8x128xf32>
    %c19 = arith.constant 19 : index
    %117 = memref.load %arg1[%c19] : memref<48xf32, #tpu.memory_space<smem>>
    %118 = vector.broadcast %117 : f32 to vector<8x128xf32>
    %119 = arith.mulf %13, %118 : vector<8x128xf32>
    %120 = arith.addf %116, %119 : vector<8x128xf32>
    %c20 = arith.constant 20 : index
    %121 = memref.load %arg1[%c20] : memref<48xf32, #tpu.memory_space<smem>>
    %122 = vector.broadcast %121 : f32 to vector<8x128xf32>
    %123 = arith.mulf %16, %122 : vector<8x128xf32>
    %124 = arith.addf %120, %123 : vector<8x128xf32>
    %c21 = arith.constant 21 : index
    %125 = memref.load %arg1[%c21] : memref<48xf32, #tpu.memory_space<smem>>
    %126 = vector.broadcast %125 : f32 to vector<8x128xf32>
    %127 = arith.mulf %19, %126 : vector<8x128xf32>
    %128 = arith.addf %124, %127 : vector<8x128xf32>
    %c22 = arith.constant 22 : index
    %129 = memref.load %arg1[%c22] : memref<48xf32, #tpu.memory_space<smem>>
    %130 = vector.broadcast %129 : f32 to vector<8x128xf32>
    %131 = arith.mulf %22, %130 : vector<8x128xf32>
    %132 = arith.addf %128, %131 : vector<8x128xf32>
    %c23 = arith.constant 23 : index
    %133 = memref.load %arg1[%c23] : memref<48xf32, #tpu.memory_space<smem>>
    %134 = vector.broadcast %133 : f32 to vector<8x128xf32>
    %135 = arith.mulf %25, %134 : vector<8x128xf32>
    %136 = arith.addf %132, %135 : vector<8x128xf32>
    %c2_21 = arith.constant 2 : index
    %137 = memref.load %arg2[%c2_21] : memref<6xf32, #tpu.memory_space<smem>>
    %138 = vector.broadcast %137 : f32 to vector<8x128xf32>
    %139 = arith.addf %136, %138 : vector<8x128xf32>
    %cst_22 = arith.constant 0.000000e+00 : f32
    %140 = vector.broadcast %cst_22 : f32 to vector<8x128xf32>
    %141 = arith.subf %140, %139 : vector<8x128xf32>
    %142 = math.exp %141 : vector<8x128xf32>
    %cst_23 = arith.constant 1.000000e+00 : f32
    %143 = vector.broadcast %cst_23 : f32 to vector<8x128xf32>
    %144 = arith.addf %143, %142 : vector<8x128xf32>
    %145 = tpu.reciprocal %144 {approx = true} : vector<8x128xf32> -> vector<8x128xf32>
    %c24 = arith.constant 24 : index
    %146 = memref.load %arg1[%c24] : memref<48xf32, #tpu.memory_space<smem>>
    %147 = vector.broadcast %146 : f32 to vector<8x128xf32>
    %148 = arith.mulf %4, %147 : vector<8x128xf32>
    %c25 = arith.constant 25 : index
    %149 = memref.load %arg1[%c25] : memref<48xf32, #tpu.memory_space<smem>>
    %150 = vector.broadcast %149 : f32 to vector<8x128xf32>
    %151 = arith.mulf %7, %150 : vector<8x128xf32>
    %152 = arith.addf %148, %151 : vector<8x128xf32>
    %c26 = arith.constant 26 : index
    %153 = memref.load %arg1[%c26] : memref<48xf32, #tpu.memory_space<smem>>
    %154 = vector.broadcast %153 : f32 to vector<8x128xf32>
    %155 = arith.mulf %10, %154 : vector<8x128xf32>
    %156 = arith.addf %152, %155 : vector<8x128xf32>
    %c27 = arith.constant 27 : index
    %157 = memref.load %arg1[%c27] : memref<48xf32, #tpu.memory_space<smem>>
    %158 = vector.broadcast %157 : f32 to vector<8x128xf32>
    %159 = arith.mulf %13, %158 : vector<8x128xf32>
    %160 = arith.addf %156, %159 : vector<8x128xf32>
    %c28 = arith.constant 28 : index
    %161 = memref.load %arg1[%c28] : memref<48xf32, #tpu.memory_space<smem>>
    %162 = vector.broadcast %161 : f32 to vector<8x128xf32>
    %163 = arith.mulf %16, %162 : vector<8x128xf32>
    %164 = arith.addf %160, %163 : vector<8x128xf32>
    %c29 = arith.constant 29 : index
    %165 = memref.load %arg1[%c29] : memref<48xf32, #tpu.memory_space<smem>>
    %166 = vector.broadcast %165 : f32 to vector<8x128xf32>
    %167 = arith.mulf %19, %166 : vector<8x128xf32>
    %168 = arith.addf %164, %167 : vector<8x128xf32>
    %c30 = arith.constant 30 : index
    %169 = memref.load %arg1[%c30] : memref<48xf32, #tpu.memory_space<smem>>
    %170 = vector.broadcast %169 : f32 to vector<8x128xf32>
    %171 = arith.mulf %22, %170 : vector<8x128xf32>
    %172 = arith.addf %168, %171 : vector<8x128xf32>
    %c31 = arith.constant 31 : index
    %173 = memref.load %arg1[%c31] : memref<48xf32, #tpu.memory_space<smem>>
    %174 = vector.broadcast %173 : f32 to vector<8x128xf32>
    %175 = arith.mulf %25, %174 : vector<8x128xf32>
    %176 = arith.addf %172, %175 : vector<8x128xf32>
    %c3_24 = arith.constant 3 : index
    %177 = memref.load %arg2[%c3_24] : memref<6xf32, #tpu.memory_space<smem>>
    %178 = vector.broadcast %177 : f32 to vector<8x128xf32>
    %179 = arith.addf %176, %178 : vector<8x128xf32>
    %cst_25 = arith.constant 0.000000e+00 : f32
    %180 = vector.broadcast %cst_25 : f32 to vector<8x128xf32>
    %181 = arith.subf %180, %179 : vector<8x128xf32>
    %182 = math.exp %181 : vector<8x128xf32>
    %cst_26 = arith.constant 1.000000e+00 : f32
    %183 = vector.broadcast %cst_26 : f32 to vector<8x128xf32>
    %184 = arith.addf %183, %182 : vector<8x128xf32>
    %185 = tpu.reciprocal %184 {approx = true} : vector<8x128xf32> -> vector<8x128xf32>
    %c32 = arith.constant 32 : index
    %186 = memref.load %arg1[%c32] : memref<48xf32, #tpu.memory_space<smem>>
    %187 = vector.broadcast %186 : f32 to vector<8x128xf32>
    %188 = arith.mulf %4, %187 : vector<8x128xf32>
    %c33 = arith.constant 33 : index
    %189 = memref.load %arg1[%c33] : memref<48xf32, #tpu.memory_space<smem>>
    %190 = vector.broadcast %189 : f32 to vector<8x128xf32>
    %191 = arith.mulf %7, %190 : vector<8x128xf32>
    %192 = arith.addf %188, %191 : vector<8x128xf32>
    %c34 = arith.constant 34 : index
    %193 = memref.load %arg1[%c34] : memref<48xf32, #tpu.memory_space<smem>>
    %194 = vector.broadcast %193 : f32 to vector<8x128xf32>
    %195 = arith.mulf %10, %194 : vector<8x128xf32>
    %196 = arith.addf %192, %195 : vector<8x128xf32>
    %c35 = arith.constant 35 : index
    %197 = memref.load %arg1[%c35] : memref<48xf32, #tpu.memory_space<smem>>
    %198 = vector.broadcast %197 : f32 to vector<8x128xf32>
    %199 = arith.mulf %13, %198 : vector<8x128xf32>
    %200 = arith.addf %196, %199 : vector<8x128xf32>
    %c36 = arith.constant 36 : index
    %201 = memref.load %arg1[%c36] : memref<48xf32, #tpu.memory_space<smem>>
    %202 = vector.broadcast %201 : f32 to vector<8x128xf32>
    %203 = arith.mulf %16, %202 : vector<8x128xf32>
    %204 = arith.addf %200, %203 : vector<8x128xf32>
    %c37 = arith.constant 37 : index
    %205 = memref.load %arg1[%c37] : memref<48xf32, #tpu.memory_space<smem>>
    %206 = vector.broadcast %205 : f32 to vector<8x128xf32>
    %207 = arith.mulf %19, %206 : vector<8x128xf32>
    %208 = arith.addf %204, %207 : vector<8x128xf32>
    %c38 = arith.constant 38 : index
    %209 = memref.load %arg1[%c38] : memref<48xf32, #tpu.memory_space<smem>>
    %210 = vector.broadcast %209 : f32 to vector<8x128xf32>
    %211 = arith.mulf %22, %210 : vector<8x128xf32>
    %212 = arith.addf %208, %211 : vector<8x128xf32>
    %c39 = arith.constant 39 : index
    %213 = memref.load %arg1[%c39] : memref<48xf32, #tpu.memory_space<smem>>
    %214 = vector.broadcast %213 : f32 to vector<8x128xf32>
    %215 = arith.mulf %25, %214 : vector<8x128xf32>
    %216 = arith.addf %212, %215 : vector<8x128xf32>
    %c4_27 = arith.constant 4 : index
    %217 = memref.load %arg2[%c4_27] : memref<6xf32, #tpu.memory_space<smem>>
    %218 = vector.broadcast %217 : f32 to vector<8x128xf32>
    %219 = arith.addf %216, %218 : vector<8x128xf32>
    %cst_28 = arith.constant 0.000000e+00 : f32
    %220 = vector.broadcast %cst_28 : f32 to vector<8x128xf32>
    %221 = arith.subf %220, %219 : vector<8x128xf32>
    %222 = math.exp %221 : vector<8x128xf32>
    %cst_29 = arith.constant 1.000000e+00 : f32
    %223 = vector.broadcast %cst_29 : f32 to vector<8x128xf32>
    %224 = arith.addf %223, %222 : vector<8x128xf32>
    %225 = tpu.reciprocal %224 {approx = true} : vector<8x128xf32> -> vector<8x128xf32>
    %c40 = arith.constant 40 : index
    %226 = memref.load %arg1[%c40] : memref<48xf32, #tpu.memory_space<smem>>
    %227 = vector.broadcast %226 : f32 to vector<8x128xf32>
    %228 = arith.mulf %4, %227 : vector<8x128xf32>
    %c41 = arith.constant 41 : index
    %229 = memref.load %arg1[%c41] : memref<48xf32, #tpu.memory_space<smem>>
    %230 = vector.broadcast %229 : f32 to vector<8x128xf32>
    %231 = arith.mulf %7, %230 : vector<8x128xf32>
    %232 = arith.addf %228, %231 : vector<8x128xf32>
    %c42 = arith.constant 42 : index
    %233 = memref.load %arg1[%c42] : memref<48xf32, #tpu.memory_space<smem>>
    %234 = vector.broadcast %233 : f32 to vector<8x128xf32>
    %235 = arith.mulf %10, %234 : vector<8x128xf32>
    %236 = arith.addf %232, %235 : vector<8x128xf32>
    %c43 = arith.constant 43 : index
    %237 = memref.load %arg1[%c43] : memref<48xf32, #tpu.memory_space<smem>>
    %238 = vector.broadcast %237 : f32 to vector<8x128xf32>
    %239 = arith.mulf %13, %238 : vector<8x128xf32>
    %240 = arith.addf %236, %239 : vector<8x128xf32>
    %c44 = arith.constant 44 : index
    %241 = memref.load %arg1[%c44] : memref<48xf32, #tpu.memory_space<smem>>
    %242 = vector.broadcast %241 : f32 to vector<8x128xf32>
    %243 = arith.mulf %16, %242 : vector<8x128xf32>
    %244 = arith.addf %240, %243 : vector<8x128xf32>
    %c45 = arith.constant 45 : index
    %245 = memref.load %arg1[%c45] : memref<48xf32, #tpu.memory_space<smem>>
    %246 = vector.broadcast %245 : f32 to vector<8x128xf32>
    %247 = arith.mulf %19, %246 : vector<8x128xf32>
    %248 = arith.addf %244, %247 : vector<8x128xf32>
    %c46 = arith.constant 46 : index
    %249 = memref.load %arg1[%c46] : memref<48xf32, #tpu.memory_space<smem>>
    %250 = vector.broadcast %249 : f32 to vector<8x128xf32>
    %251 = arith.mulf %22, %250 : vector<8x128xf32>
    %252 = arith.addf %248, %251 : vector<8x128xf32>
    %c47 = arith.constant 47 : index
    %253 = memref.load %arg1[%c47] : memref<48xf32, #tpu.memory_space<smem>>
    %254 = vector.broadcast %253 : f32 to vector<8x128xf32>
    %255 = arith.mulf %25, %254 : vector<8x128xf32>
    %256 = arith.addf %252, %255 : vector<8x128xf32>
    %c5_30 = arith.constant 5 : index
    %257 = memref.load %arg2[%c5_30] : memref<6xf32, #tpu.memory_space<smem>>
    %258 = vector.broadcast %257 : f32 to vector<8x128xf32>
    %259 = arith.addf %256, %258 : vector<8x128xf32>
    %cst_31 = arith.constant 0.000000e+00 : f32
    %260 = vector.broadcast %cst_31 : f32 to vector<8x128xf32>
    %261 = arith.subf %260, %259 : vector<8x128xf32>
    %262 = math.exp %261 : vector<8x128xf32>
    %cst_32 = arith.constant 1.000000e+00 : f32
    %263 = vector.broadcast %cst_32 : f32 to vector<8x128xf32>
    %264 = arith.addf %263, %262 : vector<8x128xf32>
    %265 = tpu.reciprocal %264 {approx = true} : vector<8x128xf32> -> vector<8x128xf32>
    %c0_33 = arith.constant 0 : index
    %266 = memref.load %arg3[%c0_33] : memref<24xf32, #tpu.memory_space<smem>>
    %267 = vector.broadcast %266 : f32 to vector<8x128xf32>
    %268 = arith.mulf %65, %267 : vector<8x128xf32>
    %c1_34 = arith.constant 1 : index
    %269 = memref.load %arg3[%c1_34] : memref<24xf32, #tpu.memory_space<smem>>
    %270 = vector.broadcast %269 : f32 to vector<8x128xf32>
    %271 = arith.mulf %105, %270 : vector<8x128xf32>
    %272 = arith.addf %268, %271 : vector<8x128xf32>
    %c2_35 = arith.constant 2 : index
    %273 = memref.load %arg3[%c2_35] : memref<24xf32, #tpu.memory_space<smem>>
    %274 = vector.broadcast %273 : f32 to vector<8x128xf32>
    %275 = arith.mulf %145, %274 : vector<8x128xf32>
    %276 = arith.addf %272, %275 : vector<8x128xf32>
    %c3_36 = arith.constant 3 : index
    %277 = memref.load %arg3[%c3_36] : memref<24xf32, #tpu.memory_space<smem>>
    %278 = vector.broadcast %277 : f32 to vector<8x128xf32>
    %279 = arith.mulf %185, %278 : vector<8x128xf32>
    %280 = arith.addf %276, %279 : vector<8x128xf32>
    %c4_37 = arith.constant 4 : index
    %281 = memref.load %arg3[%c4_37] : memref<24xf32, #tpu.memory_space<smem>>
    %282 = vector.broadcast %281 : f32 to vector<8x128xf32>
    %283 = arith.mulf %225, %282 : vector<8x128xf32>
    %284 = arith.addf %280, %283 : vector<8x128xf32>
    %c5_38 = arith.constant 5 : index
    %285 = memref.load %arg3[%c5_38] : memref<24xf32, #tpu.memory_space<smem>>
    %286 = vector.broadcast %285 : f32 to vector<8x128xf32>
    %287 = arith.mulf %265, %286 : vector<8x128xf32>
    %288 = arith.addf %284, %287 : vector<8x128xf32>
    %c0_39 = arith.constant 0 : index
    %289 = memref.load %arg4[%c0_39] : memref<4xf32, #tpu.memory_space<smem>>
    %290 = vector.broadcast %289 : f32 to vector<8x128xf32>
    %291 = arith.addf %288, %290 : vector<8x128xf32>
    %cst_40 = arith.constant 0.000000e+00 : f32
    %292 = vector.broadcast %cst_40 : f32 to vector<8x128xf32>
    %293 = arith.subf %292, %291 : vector<8x128xf32>
    %294 = math.exp %293 : vector<8x128xf32>
    %cst_41 = arith.constant 1.000000e+00 : f32
    %295 = vector.broadcast %cst_41 : f32 to vector<8x128xf32>
    %296 = arith.addf %295, %294 : vector<8x128xf32>
    %297 = tpu.reciprocal %296 {approx = true} : vector<8x128xf32> -> vector<8x128xf32>
    %c6_42 = arith.constant 6 : index
    %298 = memref.load %arg3[%c6_42] : memref<24xf32, #tpu.memory_space<smem>>
    %299 = vector.broadcast %298 : f32 to vector<8x128xf32>
    %300 = arith.mulf %65, %299 : vector<8x128xf32>
    %c7_43 = arith.constant 7 : index
    %301 = memref.load %arg3[%c7_43] : memref<24xf32, #tpu.memory_space<smem>>
    %302 = vector.broadcast %301 : f32 to vector<8x128xf32>
    %303 = arith.mulf %105, %302 : vector<8x128xf32>
    %304 = arith.addf %300, %303 : vector<8x128xf32>
    %c8_44 = arith.constant 8 : index
    %305 = memref.load %arg3[%c8_44] : memref<24xf32, #tpu.memory_space<smem>>
    %306 = vector.broadcast %305 : f32 to vector<8x128xf32>
    %307 = arith.mulf %145, %306 : vector<8x128xf32>
    %308 = arith.addf %304, %307 : vector<8x128xf32>
    %c9_45 = arith.constant 9 : index
    %309 = memref.load %arg3[%c9_45] : memref<24xf32, #tpu.memory_space<smem>>
    %310 = vector.broadcast %309 : f32 to vector<8x128xf32>
    %311 = arith.mulf %185, %310 : vector<8x128xf32>
    %312 = arith.addf %308, %311 : vector<8x128xf32>
    %c10_46 = arith.constant 10 : index
    %313 = memref.load %arg3[%c10_46] : memref<24xf32, #tpu.memory_space<smem>>
    %314 = vector.broadcast %313 : f32 to vector<8x128xf32>
    %315 = arith.mulf %225, %314 : vector<8x128xf32>
    %316 = arith.addf %312, %315 : vector<8x128xf32>
    %c11_47 = arith.constant 11 : index
    %317 = memref.load %arg3[%c11_47] : memref<24xf32, #tpu.memory_space<smem>>
    %318 = vector.broadcast %317 : f32 to vector<8x128xf32>
    %319 = arith.mulf %265, %318 : vector<8x128xf32>
    %320 = arith.addf %316, %319 : vector<8x128xf32>
    %c1_48 = arith.constant 1 : index
    %321 = memref.load %arg4[%c1_48] : memref<4xf32, #tpu.memory_space<smem>>
    %322 = vector.broadcast %321 : f32 to vector<8x128xf32>
    %323 = arith.addf %320, %322 : vector<8x128xf32>
    %cst_49 = arith.constant 0.000000e+00 : f32
    %324 = vector.broadcast %cst_49 : f32 to vector<8x128xf32>
    %325 = arith.subf %324, %323 : vector<8x128xf32>
    %326 = math.exp %325 : vector<8x128xf32>
    %cst_50 = arith.constant 1.000000e+00 : f32
    %327 = vector.broadcast %cst_50 : f32 to vector<8x128xf32>
    %328 = arith.addf %327, %326 : vector<8x128xf32>
    %329 = tpu.reciprocal %328 {approx = true} : vector<8x128xf32> -> vector<8x128xf32>
    %c12_51 = arith.constant 12 : index
    %330 = memref.load %arg3[%c12_51] : memref<24xf32, #tpu.memory_space<smem>>
    %331 = vector.broadcast %330 : f32 to vector<8x128xf32>
    %332 = arith.mulf %65, %331 : vector<8x128xf32>
    %c13_52 = arith.constant 13 : index
    %333 = memref.load %arg3[%c13_52] : memref<24xf32, #tpu.memory_space<smem>>
    %334 = vector.broadcast %333 : f32 to vector<8x128xf32>
    %335 = arith.mulf %105, %334 : vector<8x128xf32>
    %336 = arith.addf %332, %335 : vector<8x128xf32>
    %c14_53 = arith.constant 14 : index
    %337 = memref.load %arg3[%c14_53] : memref<24xf32, #tpu.memory_space<smem>>
    %338 = vector.broadcast %337 : f32 to vector<8x128xf32>
    %339 = arith.mulf %145, %338 : vector<8x128xf32>
    %340 = arith.addf %336, %339 : vector<8x128xf32>
    %c15_54 = arith.constant 15 : index
    %341 = memref.load %arg3[%c15_54] : memref<24xf32, #tpu.memory_space<smem>>
    %342 = vector.broadcast %341 : f32 to vector<8x128xf32>
    %343 = arith.mulf %185, %342 : vector<8x128xf32>
    %344 = arith.addf %340, %343 : vector<8x128xf32>
    %c16_55 = arith.constant 16 : index
    %345 = memref.load %arg3[%c16_55] : memref<24xf32, #tpu.memory_space<smem>>
    %346 = vector.broadcast %345 : f32 to vector<8x128xf32>
    %347 = arith.mulf %225, %346 : vector<8x128xf32>
    %348 = arith.addf %344, %347 : vector<8x128xf32>
    %c17_56 = arith.constant 17 : index
    %349 = memref.load %arg3[%c17_56] : memref<24xf32, #tpu.memory_space<smem>>
    %350 = vector.broadcast %349 : f32 to vector<8x128xf32>
    %351 = arith.mulf %265, %350 : vector<8x128xf32>
    %352 = arith.addf %348, %351 : vector<8x128xf32>
    %c2_57 = arith.constant 2 : index
    %353 = memref.load %arg4[%c2_57] : memref<4xf32, #tpu.memory_space<smem>>
    %354 = vector.broadcast %353 : f32 to vector<8x128xf32>
    %355 = arith.addf %352, %354 : vector<8x128xf32>
    %cst_58 = arith.constant 0.000000e+00 : f32
    %356 = vector.broadcast %cst_58 : f32 to vector<8x128xf32>
    %357 = arith.subf %356, %355 : vector<8x128xf32>
    %358 = math.exp %357 : vector<8x128xf32>
    %cst_59 = arith.constant 1.000000e+00 : f32
    %359 = vector.broadcast %cst_59 : f32 to vector<8x128xf32>
    %360 = arith.addf %359, %358 : vector<8x128xf32>
    %361 = tpu.reciprocal %360 {approx = true} : vector<8x128xf32> -> vector<8x128xf32>
    %c18_60 = arith.constant 18 : index
    %362 = memref.load %arg3[%c18_60] : memref<24xf32, #tpu.memory_space<smem>>
    %363 = vector.broadcast %362 : f32 to vector<8x128xf32>
    %364 = arith.mulf %65, %363 : vector<8x128xf32>
    %c19_61 = arith.constant 19 : index
    %365 = memref.load %arg3[%c19_61] : memref<24xf32, #tpu.memory_space<smem>>
    %366 = vector.broadcast %365 : f32 to vector<8x128xf32>
    %367 = arith.mulf %105, %366 : vector<8x128xf32>
    %368 = arith.addf %364, %367 : vector<8x128xf32>
    %c20_62 = arith.constant 20 : index
    %369 = memref.load %arg3[%c20_62] : memref<24xf32, #tpu.memory_space<smem>>
    %370 = vector.broadcast %369 : f32 to vector<8x128xf32>
    %371 = arith.mulf %145, %370 : vector<8x128xf32>
    %372 = arith.addf %368, %371 : vector<8x128xf32>
    %c21_63 = arith.constant 21 : index
    %373 = memref.load %arg3[%c21_63] : memref<24xf32, #tpu.memory_space<smem>>
    %374 = vector.broadcast %373 : f32 to vector<8x128xf32>
    %375 = arith.mulf %185, %374 : vector<8x128xf32>
    %376 = arith.addf %372, %375 : vector<8x128xf32>
    %c22_64 = arith.constant 22 : index
    %377 = memref.load %arg3[%c22_64] : memref<24xf32, #tpu.memory_space<smem>>
    %378 = vector.broadcast %377 : f32 to vector<8x128xf32>
    %379 = arith.mulf %225, %378 : vector<8x128xf32>
    %380 = arith.addf %376, %379 : vector<8x128xf32>
    %c23_65 = arith.constant 23 : index
    %381 = memref.load %arg3[%c23_65] : memref<24xf32, #tpu.memory_space<smem>>
    %382 = vector.broadcast %381 : f32 to vector<8x128xf32>
    %383 = arith.mulf %265, %382 : vector<8x128xf32>
    %384 = arith.addf %380, %383 : vector<8x128xf32>
    %c3_66 = arith.constant 3 : index
    %385 = memref.load %arg4[%c3_66] : memref<4xf32, #tpu.memory_space<smem>>
    %386 = vector.broadcast %385 : f32 to vector<8x128xf32>
    %387 = arith.addf %384, %386 : vector<8x128xf32>
    %cst_67 = arith.constant 0.000000e+00 : f32
    %388 = vector.broadcast %cst_67 : f32 to vector<8x128xf32>
    %389 = arith.subf %388, %387 : vector<8x128xf32>
    %390 = math.exp %389 : vector<8x128xf32>
    %cst_68 = arith.constant 1.000000e+00 : f32
    %391 = vector.broadcast %cst_68 : f32 to vector<8x128xf32>
    %392 = arith.addf %391, %390 : vector<8x128xf32>
    %393 = tpu.reciprocal %392 {approx = true} : vector<8x128xf32> -> vector<8x128xf32>
    %c0_69 = arith.constant 0 : index
    %394 = memref.load %arg5[%c0_69] : memref<4xf32, #tpu.memory_space<smem>>
    %395 = vector.broadcast %394 : f32 to vector<8x128xf32>
    %396 = arith.mulf %297, %395 : vector<8x128xf32>
    %c1_70 = arith.constant 1 : index
    %397 = memref.load %arg5[%c1_70] : memref<4xf32, #tpu.memory_space<smem>>
    %398 = vector.broadcast %397 : f32 to vector<8x128xf32>
    %399 = arith.mulf %329, %398 : vector<8x128xf32>
    %400 = arith.addf %396, %399 : vector<8x128xf32>
    %c2_71 = arith.constant 2 : index
    %401 = memref.load %arg5[%c2_71] : memref<4xf32, #tpu.memory_space<smem>>
    %402 = vector.broadcast %401 : f32 to vector<8x128xf32>
    %403 = arith.mulf %361, %402 : vector<8x128xf32>
    %404 = arith.addf %400, %403 : vector<8x128xf32>
    %c3_72 = arith.constant 3 : index
    %405 = memref.load %arg5[%c3_72] : memref<4xf32, #tpu.memory_space<smem>>
    %406 = vector.broadcast %405 : f32 to vector<8x128xf32>
    %407 = arith.mulf %393, %406 : vector<8x128xf32>
    %408 = arith.addf %404, %407 : vector<8x128xf32>
    %c0_73 = arith.constant 0 : index
    %409 = memref.load %arg6[%c0_73] : memref<1xf32, #tpu.memory_space<smem>>
    %410 = vector.broadcast %409 : f32 to vector<8x128xf32>
    %411 = arith.addf %408, %410 : vector<8x128xf32>
    %cst_74 = arith.constant 0.000000e+00 : f32
    %412 = vector.broadcast %cst_74 : f32 to vector<8x128xf32>
    %413 = arith.subf %412, %411 : vector<8x128xf32>
    %414 = math.exp %413 : vector<8x128xf32>
    %cst_75 = arith.constant 1.000000e+00 : f32
    %415 = vector.broadcast %cst_75 : f32 to vector<8x128xf32>
    %416 = arith.addf %415, %414 : vector<8x128xf32>
    %417 = tpu.reciprocal %416 {approx = true} : vector<8x128xf32> -> vector<8x128xf32>
    %418 = arith.index_cast %1 : i32 to index
    %c0_76 = arith.constant 0 : index
    %419 = vector.load %arg8[%418, %c0_76] : memref<8x128xf32, #tpu.memory_space<vmem>>, vector<8x128xf32>
    tpu.vector_store %arg8[%418, %c0_76], %417 {strides = array<i32>} : memref<8x128xf32, #tpu.memory_space<vmem>>, vector<8x128xf32>,
    %c1_i32 = arith.constant 1 : i32
    return
  }
  func.func @transform_0(%arg0: i32) -> i32 {
    %c0_i32 = arith.constant 0 : i32
    %c0_i32_0 = arith.constant 0 : i32
    return %c0_i32 : i32
  }
  func.func @transform_1(%arg0: i32) -> i32 {
    %c0_i32 = arith.constant 0 : i32
    %c0_i32_0 = arith.constant 0 : i32
    return %c0_i32 : i32
  }
  func.func @transform_2(%arg0: i32) -> i32 {
    %c0_i32 = arith.constant 0 : i32
    %c0_i32_0 = arith.constant 0 : i32
    return %c0_i32 : i32
  }
  func.func @transform_3(%arg0: i32) -> i32 {
    %c0_i32 = arith.constant 0 : i32
    %c0_i32_0 = arith.constant 0 : i32
    return %c0_i32 : i32
  }
  func.func @transform_4(%arg0: i32) -> i32 {
    %c0_i32 = arith.constant 0 : i32
    %c0_i32_0 = arith.constant 0 : i32
    return %c0_i32 : i32
  }
  func.func @transform_5(%arg0: i32) -> i32 {
    %c0_i32 = arith.constant 0 : i32
    %c0_i32_0 = arith.constant 0 : i32
    return %c0_i32 : i32
  }
  func.func @transform_6(%arg0: i32) -> (i32, i32, i32) {
    %c0_i32 = arith.constant 0 : i32
    %c0_i32_0 = arith.constant 0 : i32
    %c0_i32_1 = arith.constant 0 : i32
    return %c0_i32, %arg0, %c0_i32_0 : i32, i32, i32
  }
  func.func @transform_7(%arg0: i32) -> (i32, i32) {
    %c0_i32 = arith.constant 0 : i32
    %c0_i32_0 = arith.constant 0 : i32
    return %arg0, %c0_i32 : i32, i32
  }
}

</mosaic_0001>

<llo_original>
// kernel: tpu_custom_call.1
$region0: #{tpu_custom_call.1}
  #allocation0 [shape = 'u32[]', space=smem, size = 0x4, offset = 0x4, fixed_abs, tag = 'smem constant byte address 0x4 - core index']
  #allocation1 [shape = 'u32[144,128]{1,0:T(1,128)}', space=vmem, size = 0x12000, scoped, tag = 'internal scratch']
  #allocation2 [shape = 'f32[1]{0:T(128)S(6)}', space=smem, size = 0x200, scoped, tag = 'scoped memory for tpu_custom_call.1']
  %s0 = inlined_call_operand.vmem [shape: f32[48], index: 0, kind: input, shape index: {}]
  %s1 = inlined_call_operand.vmem [shape: f32[6], index: 1, kind: input, shape index: {}]
  %s2 = inlined_call_operand.vmem [shape: f32[24], index: 2, kind: input, shape index: {}]
  %s3 = inlined_call_operand.vmem [shape: f32[4], index: 3, kind: input, shape index: {}]
  %s4 = inlined_call_operand.vmem [shape: f32[4], index: 4, kind: input, shape index: {}]
  %s5 = inlined_call_operand.<no memory space> [shape: f32[1], index: 5, kind: input, shape index: {}]
  %s6 = inlined_call_operand.hbm [shape: f32[8,8,128], index: 6, kind: input, shape index: {}]
  %s7 = inlined_call_operand.hbm [shape: f32[8,128], index: 7, kind: output, shape index: {}]
  %s8 = sld [smem:[#allocation0]]
  $region62: #{tpu_custom_call.1} parent=0
    _
  %s10 = ssub.s32 1, %s8
  %s11 = scalar_select 0, %s10, %s8
  %12 = sst [smem:[#allocation2]] %s5
  $region1: #{tpu_custom_call.1} parent=0
    #allocation3 [shape = 'u8[512]{0}', space=smem, size = 0x200, scoped, tag = 'input window, operand 0, single buffered']
    #allocation4 [shape = 's32[1]{0}', space=sflag, size = 0x4, scoped, tag = 'scoped memory for tpu_custom_call.1']
    #allocation5 [shape = 's32[1]{0}', space=sflag, size = 0x4, scoped, tag = 'scoped memory for tpu_custom_call.1']
    #allocation6 [shape = 's32[1]{0}', space=sflag, size = 0x4, scoped, tag = 'scoped memory for tpu_custom_call.1']
    #allocation7 [shape = 'u8[512]{0}', space=smem, size = 0x200, scoped, tag = 'input window, operand 1, single buffered']
    #allocation8 [shape = 's32[1]{0}', space=sflag, size = 0x4, scoped, tag = 'scoped memory for tpu_custom_call.1']
    #allocation9 [shape = 'u8[512]{0}', space=smem, size = 0x200, scoped, tag = 'input window, operand 2, single buffered']
    #allocation10 [shape = 'u8[512]{0}', space=smem, size = 0x200, scoped, tag = 'input window, operand 3, single buffered']
    #allocation11 [shape = 's32[1]{0}', space=sflag, size = 0x4, scoped, tag = 'scoped memory for tpu_custom_call.1']
    #allocation12 [shape = 'u8[512]{0}', space=smem, size = 0x200, scoped, tag = 'input window, operand 4, single buffered']
    #allocation13 [shape = 'u8[32768]{0}', space=vmem, size = 0x8000, scoped, tag = 'input window, operand 6, single buffered']
    #allocation14 [shape = 'u8[4096]{0}', space=vmem, size = 0x1000, scoped, tag = 'output window, operand 0, single buffered']
    %13 = vsyncpa [#allocation6], 0
    %14 = vsyncpa [#allocation8], 0
    %15 = vsyncpa [#allocation11], 0
    %16 = vsyncpa [#allocation4], 0
    %17 = vsyncpa [#allocation5], 0
    // Predicated region
    $region2: #{tpu_custom_call.1} parent=1 // pred_check
      _
    $region3: #{tpu_custom_call.1} parent=1 // pred_check_branch
      %19 = sbr.rel (0) target = $region5
    $region4: #{tpu_custom_call.1} parent=1 // pred_region
      %s21 = ssub.s32 16, 16
      %22 = vsyncadd [#allocation6], %s21
      %s24 = sshll.u32 %s0, 4
      %s25 = int_to_ptr.vmem [resolvable:$true] %s24
      %27 = dma.vmem_to_smem %s25, 16, [#allocation3], [#allocation6]
    $region5: #{tpu_custom_call.1} parent=1 // pred_fallthru
      _
    // Predicated region
    $region6: #{tpu_custom_call.1} parent=1 // pred_check
      _
    $region7: #{tpu_custom_call.1} parent=1 // pred_check_branch
      %29 = sbr.rel (0) target = $region9
    $region8: #{tpu_custom_call.1} parent=1 // pred_region
      %s31 = ssub.s32 16, 16
      %32 = vsyncadd [#allocation8], %s31
      %s34 = sshll.u32 %s1, 4
      %s35 = int_to_ptr.vmem [resolvable:$true] %s34
      %37 = dma.vmem_to_smem %s35, 16, [#allocation7], [#allocation8]
    $region9: #{tpu_custom_call.1} parent=1 // pred_fallthru
      _
    // Predicated region
    $region10: #{tpu_custom_call.1} parent=1 // pred_check
      _
    $region11: #{tpu_custom_call.1} parent=1 // pred_check_branch
      %39 = sbr.rel (0) target = $region13
    $region12: #{tpu_custom_call.1} parent=1 // pred_region
      %s41 = ssub.s32 16, 16
      %42 = vsyncadd [#allocation8], %s41
      %s44 = sshll.u32 %s2, 4
      %s45 = int_to_ptr.vmem [resolvable:$true] %s44
      %47 = dma.vmem_to_smem %s45, 16, [#allocation9], [#allocation8]
    $region13: #{tpu_custom_call.1} parent=1 // pred_fallthru
      _
    // Predicated region
    $region14: #{tpu_custom_call.1} parent=1 // pred_check
      _
    $region15: #{tpu_custom_call.1} parent=1 // pred_check_branch
      %49 = sbr.rel (0) target = $region17
    $region16: #{tpu_custom_call.1} parent=1 // pred_region
      %s51 = ssub.s32 16, 16
      %52 = vsyncadd [#allocation11], %s51
      %s54 = sshll.u32 %s3, 4
      %s55 = int_to_ptr.vmem [resolvable:$true] %s54
      %57 = dma.vmem_to_smem %s55, 16, [#allocation10], [#allocation11]
    $region17: #{tpu_custom_call.1} parent=1 // pred_fallthru
      _
    // Predicated region
    $region18: #{tpu_custom_call.1} parent=1 // pred_check
      _
    $region19: #{tpu_custom_call.1} parent=1 // pred_check_branch
      %59 = sbr.rel (0) target = $region21
    $region20: #{tpu_custom_call.1} parent=1 // pred_region
      %s61 = ssub.s32 16, 16
      %62 = vsyncadd [#allocation11], %s61
      %s64 = sshll.u32 %s4, 4
      %s65 = int_to_ptr.vmem [resolvable:$true] %s64
      %67 = dma.vmem_to_smem %s65, 16, [#allocation12], [#allocation11]
    $region21: #{tpu_custom_call.1} parent=1 // pred_fallthru
      _
    // Predicated region
    $region22: #{tpu_custom_call.1} parent=1 // pred_check
      _
    $region23: #{tpu_custom_call.1} parent=1 // pred_check_branch
      %69 = sbr.rel (0) target = $region25
    $region24: #{tpu_custom_call.1} parent=1 // pred_region
      _
    $region25: #{tpu_custom_call.1} parent=1 // pred_fallthru
      _
    // Predicated region
    $region26: #{tpu_custom_call.1} parent=1 // pred_check
      _
    $region27: #{tpu_custom_call.1} parent=1 // pred_check_branch
      %71 = sbr.rel (0) target = $region29
    $region28: #{tpu_custom_call.1} parent=1 // pred_region
      %s73 = ssub.s32 1024, 1024
      %74 = vsyncadd [#allocation4], %s73
      %s75 = sshll.u32 [#allocation13], 4
      %s76 = int_to_ptr.vmem [resolvable:$true] %s75
      %81 = dma.hbm_to_vmem [thread:$0]  %s6, 1024, %s76, [#allocation4], 128, 128, 8
    $region29: #{tpu_custom_call.1} parent=1 // pred_fallthru
      _
    // Predicated region
    $region30: #{tpu_custom_call.1} parent=1 // pred_check
      _
    $region31: #{tpu_custom_call.1} parent=1 // pred_check_branch
      %83 = sbr.rel (0) target = $region33
    $region32: #{tpu_custom_call.1} parent=1 // pred_region
      %84 = dma.done [#allocation6], 16
    $region33: #{tpu_custom_call.1} parent=1 // pred_fallthru
      _
    // Predicated region
    $region34: #{tpu_custom_call.1} parent=1 // pred_check
      _
    $region35: #{tpu_custom_call.1} parent=1 // pred_check_branch
      %86 = sbr.rel (0) target = $region37
    $region36: #{tpu_custom_call.1} parent=1 // pred_region
      %87 = dma.done [#allocation8], 16
    $region37: #{tpu_custom_call.1} parent=1 // pred_fallthru
      _
    // Predicated region
    $region38: #{tpu_custom_call.1} parent=1 // pred_check
      _
    $region39: #{tpu_custom_call.1} parent=1 // pred_check_branch
      %89 = sbr.rel (0) target = $region41
    $region40: #{tpu_custom_call.1} parent=1 // pred_region
      %90 = dma.done [#allocation8], 16
    $region41: #{tpu_custom_call.1} parent=1 // pred_fallthru
      _
    // Predicated region
    $region42: #{tpu_custom_call.1} parent=1 // pred_check
      _
    $region43: #{tpu_custom_call.1} parent=1 // pred_check_branch
      %92 = sbr.rel (0) target = $region45
    $region44: #{tpu_custom_call.1} parent=1 // pred_region
      %93 = dma.done [#allocation11], 16
    $region45: #{tpu_custom_call.1} parent=1 // pred_fallthru
      _
    // Predicated region
    $region46: #{tpu_custom_call.1} parent=1 // pred_check
      _
    $region47: #{tpu_custom_call.1} parent=1 // pred_check_branch
      %95 = sbr.rel (0) target = $region49
    $region48: #{tpu_custom_call.1} parent=1 // pred_region
      %96 = dma.done [#allocation11], 16
    $region49: #{tpu_custom_call.1} parent=1 // pred_fallthru
      _
    // Predicated region
    $region50: #{tpu_custom_call.1} parent=1 // pred_check
      _
    $region51: #{tpu_custom_call.1} parent=1 // pred_check_branch
      %98 = sbr.rel (0) target = $region53
    $region52: #{tpu_custom_call.1} parent=1 // pred_region
      %99 = dma.done [#allocation4], 1024
    $region53: #{tpu_custom_call.1} parent=1 // pred_fallthru
      _
    %100 = sfence
    %v101 = vld [vmem:[#allocation13] sm:$0xff]
    %s102 = sadd.s32 0, 8
    %s103 = scalar_lea.vmem [#allocation13], %s102
    %v104 = vld [vmem:[%s103] sm:$0xff]
    %s105 = sadd.s32 0, 16
    %s106 = scalar_lea.vmem [#allocation13], %s105
    %v107 = vld [vmem:[%s106] sm:$0xff]
    %s108 = sadd.s32 0, 24
    %s109 = scalar_lea.vmem [#allocation13], %s108
    %v110 = vld [vmem:[%s109] sm:$0xff]
    %s111 = sadd.s32 0, 32
    %s112 = scalar_lea.vmem [#allocation13], %s111
    %v113 = vld [vmem:[%s112] sm:$0xff]
    %s114 = sadd.s32 0, 40
    %s115 = scalar_lea.vmem [#allocation13], %s114
    %v116 = vld [vmem:[%s115] sm:$0xff]
    %s117 = sadd.s32 0, 48
    %s118 = scalar_lea.vmem [#allocation13], %s117
    %v119 = vld [vmem:[%s118] sm:$0xff]
    %s120 = sadd.s32 0, 56
    %s121 = scalar_lea.vmem [#allocation13], %s120
    %v122 = vld [vmem:[%s121] sm:$0xff]
    %s123 = sld [smem:[#allocation3]]
    %v124 = vstv %s123
    %v125 = vmul.f32 %v101, %v124
    %s126 = sld [smem:[#allocation3 + $0x1]]
    %v127 = vstv %s126
    %v128 = vmul.f32 %v104, %v127
    %v129 = vadd.f32 %v125, %v128
    %s130 = sld [smem:[#allocation3 + $0x2]]
    %v131 = vstv %s130
    %v132 = vmul.f32 %v107, %v131
    %v133 = vadd.f32 %v129, %v132
    %s134 = sld [smem:[#allocation3 + $0x3]]
    %v135 = vstv %s134
    %v136 = vmul.f32 %v110, %v135
    %v137 = vadd.f32 %v133, %v136
    %s138 = sld [smem:[#allocation3 + $0x4]]
    %v139 = vstv %s138
    %v140 = vmul.f32 %v113, %v139
    %v141 = vadd.f32 %v137, %v140
    %s142 = sld [smem:[#allocation3 + $0x5]]
    %v143 = vstv %s142
    %v144 = vmul.f32 %v116, %v143
    %v145 = vadd.f32 %v141, %v144
    %s146 = sld [smem:[#allocation3 + $0x6]]
    %v147 = vstv %s146
    %v148 = vmul.f32 %v119, %v147
    %v149 = vadd.f32 %v145, %v148
    %s150 = sld [smem:[#allocation3 + $0x7]]
    %v151 = vstv %s150
    %v152 = vmul.f32 %v122, %v151
    %v153 = vadd.f32 %v149, %v152
    %s154 = sld [smem:[#allocation7]]
    %v155 = vstv %s154
    %v156 = vadd.f32 %v153, %v155
    %v157 = vsub.f32 0.0, %v156
    %v158 = vmul.f32 %v157, 1.442695
    %v159 = vpow.pop %v158
    %v160 = vadd.f32 %v159, 1.0
    %v161 = vrcp.pop %v160
    %s162 = sld [smem:[#allocation3 + $0x8]]
    %v163 = vstv %s162
    %v164 = vmul.f32 %v101, %v163
    %s165 = sld [smem:[#allocation3 + $0x9]]
    %v166 = vstv %s165
    %v167 = vmul.f32 %v104, %v166
    %v168 = vadd.f32 %v164, %v167
    %s169 = sld [smem:[#allocation3 + $0xa]]
    %v170 = vstv %s169
    %v171 = vmul.f32 %v107, %v170
    %v172 = vadd.f32 %v168, %v171
    %s173 = sld [smem:[#allocation3 + $0xb]]
    %v174 = vstv %s173
    %v175 = vmul.f32 %v110, %v174
    %v176 = vadd.f32 %v172, %v175
    %s177 = sld [smem:[#allocation3 + $0xc]]
    %v178 = vstv %s177
    %v179 = vmul.f32 %v113, %v178
    %v180 = vadd.f32 %v176, %v179
    %s181 = sld [smem:[#allocation3 + $0xd]]
    %v182 = vstv %s181
    %v183 = vmul.f32 %v116, %v182
    %v184 = vadd.f32 %v180, %v183
    %s185 = sld [smem:[#allocation3 + $0xe]]
    %v186 = vstv %s185
    %v187 = vmul.f32 %v119, %v186
    %v188 = vadd.f32 %v184, %v187
    %s189 = sld [smem:[#allocation3 + $0xf]]
    %v190 = vstv %s189
    %v191 = vmul.f32 %v122, %v190
    %v192 = vadd.f32 %v188, %v191
    %s193 = sld [smem:[#allocation7 + $0x1]]
    %v194 = vstv %s193
    %v195 = vadd.f32 %v192, %v194
    %v196 = vsub.f32 0.0, %v195
    %v197 = vmul.f32 %v196, 1.442695
    %v198 = vpow.pop %v197
    %v199 = vadd.f32 %v198, 1.0
    %v200 = vrcp.pop %v199
    %s201 = sld [smem:[#allocation3 + $0x10]]
    %v202 = vstv %s201
    %v203 = vmul.f32 %v101, %v202
    %s204 = sld [smem:[#allocation3 + $0x11]]
    %v205 = vstv %s204
    %v206 = vmul.f32 %v104, %v205
    %v207 = vadd.f32 %v203, %v206
    %s208 = sld [smem:[#allocation3 + $0x12]]
    %v209 = vstv %s208
    %v210 = vmul.f32 %v107, %v209
    %v211 = vadd.f32 %v207, %v210
    %s212 = sld [smem:[#allocation3 + $0x13]]
    %v213 = vstv %s212
    %v214 = vmul.f32 %v110, %v213
    %v215 = vadd.f32 %v211, %v214
    %s216 = sld [smem:[#allocation3 + $0x14]]
    %v217 = vstv %s216
    %v218 = vmul.f32 %v113, %v217
    %v219 = vadd.f32 %v215, %v218
    %s220 = sld [smem:[#allocation3 + $0x15]]
    %v221 = vstv %s220
    %v222 = vmul.f32 %v116, %v221
    %v223 = vadd.f32 %v219, %v222
    %s224 = sld [smem:[#allocation3 + $0x16]]
    %v225 = vstv %s224
    %v226 = vmul.f32 %v119, %v225
    %v227 = vadd.f32 %v223, %v226
    %s228 = sld [smem:[#allocation3 + $0x17]]
    %v229 = vstv %s228
    %v230 = vmul.f32 %v122, %v229
    %v231 = vadd.f32 %v227, %v230
    %s232 = sld [smem:[#allocation7 + $0x2]]
    %v233 = vstv %s232
    %v234 = vadd.f32 %v231, %v233
    %v235 = vsub.f32 0.0, %v234
    %v236 = vmul.f32 %v235, 1.442695
    %v237 = vpow.pop %v236
    %v238 = vadd.f32 %v237, 1.0
    %v239 = vrcp.pop %v238
    %s240 = sld [smem:[#allocation3 + $0x18]]
    %v241 = vstv %s240
    %v242 = vmul.f32 %v101, %v241
    %s243 = sld [smem:[#allocation3 + $0x19]]
    %v244 = vstv %s243
    %v245 = vmul.f32 %v104, %v244
    %v246 = vadd.f32 %v242, %v245
    %s247 = sld [smem:[#allocation3 + $0x1a]]
    %v248 = vstv %s247
    %v249 = vmul.f32 %v107, %v248
    %v250 = vadd.f32 %v246, %v249
    %s251 = sld [smem:[#allocation3 + $0x1b]]
    %v252 = vstv %s251
    %v253 = vmul.f32 %v110, %v252
    %v254 = vadd.f32 %v250, %v253
    %s255 = sld [smem:[#allocation3 + $0x1c]]
    %v256 = vstv %s255
    %v257 = vmul.f32 %v113, %v256
    %v258 = vadd.f32 %v254, %v257
    %s259 = sld [smem:[#allocation3 + $0x1d]]
    %v260 = vstv %s259
    %v261 = vmul.f32 %v116, %v260
    %v262 = vadd.f32 %v258, %v261
    %s263 = sld [smem:[#allocation3 + $0x1e]]
    %v264 = vstv %s263
    %v265 = vmul.f32 %v119, %v264
    %v266 = vadd.f32 %v262, %v265
    %s267 = sld [smem:[#allocation3 + $0x1f]]
    %v268 = vstv %s267
    %v269 = vmul.f32 %v122, %v268
    %v270 = vadd.f32 %v266, %v269
    %s271 = sld [smem:[#allocation7 + $0x3]]
    %v272 = vstv %s271
    %v273 = vadd.f32 %v270, %v272
    %v274 = vsub.f32 0.0, %v273
    %v275 = vmul.f32 %v274, 1.442695
    %v276 = vpow.pop %v275
    %v277 = vadd.f32 %v276, 1.0
    %v278 = vrcp.pop %v277
    %s279 = sld [smem:[#allocation3 + $0x20]]
    %v280 = vstv %s279
    %v281 = vmul.f32 %v101, %v280
    %s282 = sld [smem:[#allocation3 + $0x21]]
    %v283 = vstv %s282
    %v284 = vmul.f32 %v104, %v283
    %v285 = vadd.f32 %v281, %v284
    %s286 = sld [smem:[#allocation3 + $0x22]]
    %v287 = vstv %s286
    %v288 = vmul.f32 %v107, %v287
    %v289 = vadd.f32 %v285, %v288
    %s290 = sld [smem:[#allocation3 + $0x23]]
    %v291 = vstv %s290
    %v292 = vmul.f32 %v110, %v291
    %v293 = vadd.f32 %v289, %v292
    %s294 = sld [smem:[#allocation3 + $0x24]]
    %v295 = vstv %s294
    %v296 = vmul.f32 %v113, %v295
    %v297 = vadd.f32 %v293, %v296
    %s298 = sld [smem:[#allocation3 + $0x25]]
    %v299 = vstv %s298
    %v300 = vmul.f32 %v116, %v299
    %v301 = vadd.f32 %v297, %v300
    %s302 = sld [smem:[#allocation3 + $0x26]]
    %v303 = vstv %s302
    %v304 = vmul.f32 %v119, %v303
    %v305 = vadd.f32 %v301, %v304
    %s306 = sld [smem:[#allocation3 + $0x27]]
    %v307 = vstv %s306
    %v308 = vmul.f32 %v122, %v307
    %v309 = vadd.f32 %v305, %v308
    %s310 = sld [smem:[#allocation7 + $0x4]]
    %v311 = vstv %s310
    %v312 = vadd.f32 %v309, %v311
    %v313 = vsub.f32 0.0, %v312
    %v314 = vmul.f32 %v313, 1.442695
    %v315 = vpow.pop %v314
    %v316 = vadd.f32 %v315, 1.0
    %v317 = vrcp.pop %v316
    %s318 = sld [smem:[#allocation3 + $0x28]]
    %v319 = vstv %s318
    %v320 = vmul.f32 %v101, %v319
    %s321 = sld [smem:[#allocation3 + $0x29]]
    %v322 = vstv %s321
    %v323 = vmul.f32 %v104, %v322
    %v324 = vadd.f32 %v320, %v323
    %s325 = sld [smem:[#allocation3 + $0x2a]]
    %v326 = vstv %s325
    %v327 = vmul.f32 %v107, %v326
    %v328 = vadd.f32 %v324, %v327
    %s329 = sld [smem:[#allocation3 + $0x2b]]
    %v330 = vstv %s329
    %v331 = vmul.f32 %v110, %v330
    %v332 = vadd.f32 %v328, %v331
    %s333 = sld [smem:[#allocation3 + $0x2c]]
    %v334 = vstv %s333
    %v335 = vmul.f32 %v113, %v334
    %v336 = vadd.f32 %v332, %v335
    %s337 = sld [smem:[#allocation3 + $0x2d]]
    %v338 = vstv %s337
    %v339 = vmul.f32 %v116, %v338
    %v340 = vadd.f32 %v336, %v339
    %s341 = sld [smem:[#allocation3 + $0x2e]]
    %v342 = vstv %s341
    %v343 = vmul.f32 %v119, %v342
    %v344 = vadd.f32 %v340, %v343
    %s345 = sld [smem:[#allocation3 + $0x2f]]
    %v346 = vstv %s345
    %v347 = vmul.f32 %v122, %v346
    %v348 = vadd.f32 %v344, %v347
    %s349 = sld [smem:[#allocation7 + $0x5]]
    %v350 = vstv %s349
    %v351 = vadd.f32 %v348, %v350
    %v352 = vsub.f32 0.0, %v351
    %v353 = vmul.f32 %v352, 1.442695
    %v354 = vpow.pop %v353
    %v355 = vadd.f32 %v354, 1.0
    %v356 = vrcp.pop %v355
    %s357 = sld [smem:[#allocation9]]
    %v358 = vstv %s357
    %v359 = vmul.f32 %v161, %v358
    %s360 = sld [smem:[#allocation9 + $0x1]]
    %v361 = vstv %s360
    %v362 = vmul.f32 %v200, %v361
    %v363 = vadd.f32 %v359, %v362
    %s364 = sld [smem:[#allocation9 + $0x2]]
    %v365 = vstv %s364
    %v366 = vmul.f32 %v239, %v365
    %v367 = vadd.f32 %v363, %v366
    %s368 = sld [smem:[#allocation9 + $0x3]]
    %v369 = vstv %s368
    %v370 = vmul.f32 %v278, %v369
    %v371 = vadd.f32 %v367, %v370
    %s372 = sld [smem:[#allocation9 + $0x4]]
    %v373 = vstv %s372
    %v374 = vmul.f32 %v317, %v373
    %v375 = vadd.f32 %v371, %v374
    %s376 = sld [smem:[#allocation9 + $0x5]]
    %v377 = vstv %s376
    %v378 = vmul.f32 %v356, %v377
    %v379 = vadd.f32 %v375, %v378
    %s380 = sld [smem:[#allocation10]]
    %v381 = vstv %s380
    %v382 = vadd.f32 %v379, %v381
    %v383 = vsub.f32 0.0, %v382
    %v384 = vmul.f32 %v383, 1.442695
    %v385 = vpow.pop %v384
    %v386 = vadd.f32 %v385, 1.0
    %v387 = vrcp.pop %v386
    %s388 = sld [smem:[#allocation9 + $0x6]]
    %v389 = vstv %s388
    %v390 = vmul.f32 %v161, %v389
    %s391 = sld [smem:[#allocation9 + $0x7]]
    %v392 = vstv %s391
    %v393 = vmul.f32 %v200, %v392
    %v394 = vadd.f32 %v390, %v393
    %s395 = sld [smem:[#allocation9 + $0x8]]
    %v396 = vstv %s395
    %v397 = vmul.f32 %v239, %v396
    %v398 = vadd.f32 %v394, %v397
    %s399 = sld [smem:[#allocation9 + $0x9]]
    %v400 = vstv %s399
    %v401 = vmul.f32 %v278, %v400
    %v402 = vadd.f32 %v398, %v401
    %s403 = sld [smem:[#allocation9 + $0xa]]
    %v404 = vstv %s403
    %v405 = vmul.f32 %v317, %v404
    %v406 = vadd.f32 %v402, %v405
    %s407 = sld [smem:[#allocation9 + $0xb]]
    %v408 = vstv %s407
    %v409 = vmul.f32 %v356, %v408
    %v410 = vadd.f32 %v406, %v409
    %s411 = sld [smem:[#allocation10 + $0x1]]
    %v412 = vstv %s411
    %v413 = vadd.f32 %v410, %v412
    %v414 = vsub.f32 0.0, %v413
    %v415 = vmul.f32 %v414, 1.442695
    %v416 = vpow.pop %v415
    %v417 = vadd.f32 %v416, 1.0
    %v418 = vrcp.pop %v417
    %s419 = sld [smem:[#allocation9 + $0xc]]
    %v420 = vstv %s419
    %v421 = vmul.f32 %v161, %v420
    %s422 = sld [smem:[#allocation9 + $0xd]]
    %v423 = vstv %s422
    %v424 = vmul.f32 %v200, %v423
    %v425 = vadd.f32 %v421, %v424
    %s426 = sld [smem:[#allocation9 + $0xe]]
    %v427 = vstv %s426
    %v428 = vmul.f32 %v239, %v427
    %v429 = vadd.f32 %v425, %v428
    %s430 = sld [smem:[#allocation9 + $0xf]]
    %v431 = vstv %s430
    %v432 = vmul.f32 %v278, %v431
    %v433 = vadd.f32 %v429, %v432
    %s434 = sld [smem:[#allocation9 + $0x10]]
    %v435 = vstv %s434
    %v436 = vmul.f32 %v317, %v435
    %v437 = vadd.f32 %v433, %v436
    %s438 = sld [smem:[#allocation9 + $0x11]]
    %v439 = vstv %s438
    %v440 = vmul.f32 %v356, %v439
    %v441 = vadd.f32 %v437, %v440
    %s442 = sld [smem:[#allocation10 + $0x2]]
    %v443 = vstv %s442
    %v444 = vadd.f32 %v441, %v443
    %v445 = vsub.f32 0.0, %v444
    %v446 = vmul.f32 %v445, 1.442695
    %v447 = vpow.pop %v446
    %v448 = vadd.f32 %v447, 1.0
    %v449 = vrcp.pop %v448
    %s450 = sld [smem:[#allocation9 + $0x12]]
    %v451 = vstv %s450
    %v452 = vmul.f32 %v161, %v451
    %s453 = sld [smem:[#allocation9 + $0x13]]
    %v454 = vstv %s453
    %v455 = vmul.f32 %v200, %v454
    %v456 = vadd.f32 %v452, %v455
    %s457 = sld [smem:[#allocation9 + $0x14]]
    %v458 = vstv %s457
    %v459 = vmul.f32 %v239, %v458
    %v460 = vadd.f32 %v456, %v459
    %s461 = sld [smem:[#allocation9 + $0x15]]
    %v462 = vstv %s461
    %v463 = vmul.f32 %v278, %v462
    %v464 = vadd.f32 %v460, %v463
    %s465 = sld [smem:[#allocation9 + $0x16]]
    %v466 = vstv %s465
    %v467 = vmul.f32 %v317, %v466
    %v468 = vadd.f32 %v464, %v467
    %s469 = sld [smem:[#allocation9 + $0x17]]
    %v470 = vstv %s469
    %v471 = vmul.f32 %v356, %v470
    %v472 = vadd.f32 %v468, %v471
    %s473 = sld [smem:[#allocation10 + $0x3]]
    %v474 = vstv %s473
    %v475 = vadd.f32 %v472, %v474
    %v476 = vsub.f32 0.0, %v475
    %v477 = vmul.f32 %v476, 1.442695
    %v478 = vpow.pop %v477
    %v479 = vadd.f32 %v478, 1.0
    %v480 = vrcp.pop %v479
    %s481 = sld [smem:[#allocation12]]
    %v482 = vstv %s481
    %v483 = vmul.f32 %v387, %v482
    %s484 = sld [smem:[#allocation12 + $0x1]]
    %v485 = vstv %s484
    %v486 = vmul.f32 %v418, %v485
    %v487 = vadd.f32 %v483, %v486
    %s488 = sld [smem:[#allocation12 + $0x2]]
    %v489 = vstv %s488
    %v490 = vmul.f32 %v449, %v489
    %v491 = vadd.f32 %v487, %v490
    %s492 = sld [smem:[#allocation12 + $0x3]]
    %v493 = vstv %s492
    %v494 = vmul.f32 %v480, %v493
    %v495 = vadd.f32 %v491, %v494
    %s496 = sld [smem:[#allocation2]]
    %v497 = vstv %s496
    %v498 = vadd.f32 %v495, %v497
    %v499 = vsub.f32 0.0, %v498
    %v500 = vmul.f32 %v499, 1.442695
    %v501 = vpow.pop %v500
    %v502 = vadd.f32 %v501, 1.0
    %v503 = vrcp.pop %v502
    %504 = vst [vmem:[#allocation14] sm:$0xff] %v503
    // Predicated region
    $region54: #{tpu_custom_call.1} parent=1 // pred_check
      _
    $region55: #{tpu_custom_call.1} parent=1 // pred_check_branch
      %506 = sbr.rel (0) target = $region57
    $region56: #{tpu_custom_call.1} parent=1 // pred_region
      %s508 = ssub.s32 128, 128
      %509 = vsyncadd [#allocation5], %s508
      %s511 = sshll.u32 [#allocation14], 4
      %s512 = int_to_ptr.vmem [resolvable:$true] %s511
      %514 = dma.vmem_to_hbm [thread:$0]  %s512, 128, %s7, [#allocation5]
    $region57: #{tpu_custom_call.1} parent=1 // pred_fallthru
      _
    // Predicated region
    $region58: #{tpu_custom_call.1} parent=1 // pred_check
      _
    $region59: #{tpu_custom_call.1} parent=1 // pred_check_branch
      %516 = sbr.rel (0) target = $region61
    $region60: #{tpu_custom_call.1} parent=1 // pred_region
      %517 = dma.done [#allocation5], 128
    $region61: #{tpu_custom_call.1} parent=1 // pred_fallthru
      _
    %518 = vsyncpa [#allocation4], 1
    %519 = vsyncpa [#allocation5], 1
    %520 = vsyncpa [#allocation6], 1
    %521 = vsyncpa [#allocation8], 1
    %522 = vsyncpa [#allocation11], 1

</llo_original>
